<compile_context>
chip_gen: v7x
topology: tpu7x:2x2x1
jax: 0.10.0
libtpu: 0.0.40
codegen_flags: <defaults>
</compile_context>

<pallas_src>
import jax
import jax.numpy as jnp
import numpy as np
from jax.experimental import pallas as pl
from jax.experimental.pallas import tpu as pltpu

EPS = 1e-6
MAX_FEATURE_VALUE = 6.0
MIN_FEATURE_VALUE = -6.0
MISSING_VALUE = -1337.0

# ---- synthetic normalization spec (row layout of the feature-major matrix) --
N_BINARY, N_PROB, N_CONT, N_BOXCOX = 2, 2, 4, 2
N_ENUM_VALUES = 4                # one ENUM feature with 4 possible values
N_QUANTILE, N_QBOUND = 2, 5      # two QUANTILE features, 5 boundaries each
N_CACTION = 2
N_CB = N_CONT + N_BOXCOX         # fused CONTINUOUS + BOXCOX normalize rows (6)
F_IN = N_BINARY + N_PROB + N_CONT + N_BOXCOX + 1 + N_QUANTILE + N_CACTION   # 15
F_OUT = (N_BINARY + N_PROB + N_CONT + N_BOXCOX + N_ENUM_VALUES
         + N_QUANTILE + N_CACTION)                                           # 18

# input row offsets (feature-major)
R_BIN = 0
R_PROB = R_BIN + N_BINARY        # 2
R_CONT = R_PROB + N_PROB         # 4
R_BOX = R_CONT + N_CONT          # 8
R_ENUM = R_BOX + N_BOXCOX        # 10
R_Q = R_ENUM + 1                 # 11
R_CA = R_Q + N_QUANTILE          # 13

# output row offsets (feature-major, ENUM expands to one-hot)
O_BIN = 0
O_PROB = O_BIN + N_BINARY        # 2
O_CONT = O_PROB + N_PROB         # 4   (CONT + BOXCOX occupy rows 4..9)
O_ENUM = O_CONT + N_CB           # 10
O_Q = O_ENUM + N_ENUM_VALUES     # 14
O_CA = O_Q + N_QUANTILE          # 16

# ---- packed parameter slab layout: one (P_ROWS, 1) f32 tensor ---------------
P_CB_MEAN = 0                                   # cont means (4) + boxcox means (2)
P_CB_INV_STD = P_CB_MEAN + N_CB                 # 6
P_BC_SHIFT = P_CB_INV_STD + N_CB                # 12
P_BC_LAMBDA = P_BC_SHIFT + N_BOXCOX             # 14
P_BC_INV_LAM = P_BC_LAMBDA + N_BOXCOX           # 16
P_ENUM = P_BC_INV_LAM + N_BOXCOX                # 18
P_QB = P_ENUM + N_ENUM_VALUES                   # 22  (row = P_QB + b*N_QUANTILE + f)
P_QMAX = P_QB + N_QBOUND * N_QUANTILE           # 32
P_QMIN = P_QMAX + N_QUANTILE                    # 34
P_Q_INV_NUM = P_QMIN + N_QUANTILE               # 36
P_CA_MIN_SERV = P_Q_INV_NUM + N_QUANTILE        # 38
P_CA_MIN_TRAIN = P_CA_MIN_SERV + N_CACTION      # 40
P_CA_SCALE = P_CA_MIN_TRAIN + N_CACTION         # 42
P_ROWS = P_CA_SCALE + N_CACTION                 # 44

TILE_MAX = 32768                 # lanes per grid step (multiple of 128)


def preprocessor_kernel(x_ref, p_ref, o_ref):
    """x_ref: (F_IN, T), p_ref: (P_ROWS, 1), o_ref: (F_OUT, T)."""
    f32 = jnp.float32
    one = f32(1.0)
    p = p_ref[...]                                     # (P_ROWS, 1), tiny

    def prm(off, k):
        return p[off:off + k, :]                       # (k, 1) -> lane broadcast

    def nm(xs):
        return (xs != MISSING_VALUE).astype(f32)       # not-missing mask

    def clip_out(seg):
        return jnp.clip(seg, MIN_FEATURE_VALUE, MAX_FEATURE_VALUE)

    # ---- BINARY: 1 - (x == 0) ------------------------------------------------
    xb = x_ref[R_BIN:R_BIN + N_BINARY, :]
    o_ref[O_BIN:O_BIN + N_BINARY, :] = clip_out(
        (xb != 0.0).astype(f32) * nm(xb))

    # ---- PROBABILITY: -log(1/clamp(x, .01, .99) - 1) -------------------------
    xp_raw = x_ref[R_PROB:R_PROB + N_PROB, :]
    xp = jnp.clip(xp_raw, 0.01, 0.99)
    o_ref[O_PROB:O_PROB + N_PROB, :] = clip_out(
        (-jnp.log(one / xp - one)) * nm(xp_raw))

    # ---- CONTINUOUS + BOXCOX (fused 6-row affine normalize) ------------------
    # boxcox transform: ((x+shift)^lambda - 1)/lambda, then both go through
    # clamp((v - mean) * inv_std, -3, 3) as one stacked (6, T) op.
    xcb = x_ref[R_CONT:R_CONT + N_CB, :]               # raw cont(4) + boxcox(2)
    xbc = xcb[N_CONT:, :]
    shifted = jnp.maximum(xbc + prm(P_BC_SHIFT, N_BOXCOX), 1e-6)     # base > 0
    bc = (jnp.exp(prm(P_BC_LAMBDA, N_BOXCOX) * jnp.log(shifted)) - one) \
        * prm(P_BC_INV_LAM, N_BOXCOX)                                # pow via exp/log
    v = jnp.concatenate([xcb[:N_CONT, :], bc], axis=0)               # (6, T)
    cb = jnp.clip((v - prm(P_CB_MEAN, N_CB)) * prm(P_CB_INV_STD, N_CB),
                  -3.0, 3.0)
    o_ref[O_CONT:O_CONT + N_CB, :] = clip_out(cb * nm(xcb))

    # ---- ENUM: one-hot over possible values ----------------------------------
    xe = x_ref[R_ENUM:R_ENUM + 1, :]
    enum_hot = (xe == prm(P_ENUM, N_ENUM_VALUES)).astype(f32)        # (4, T)
    o_ref[O_ENUM:O_ENUM + N_ENUM_VALUES, :] = clip_out(enum_hot * nm(xe))

    # ---- QUANTILE: percentile with linear interpolation ----------------------
    xq = x_ref[R_Q:R_Q + N_QUANTILE, :]
    set_to_max = (xq >= prm(P_QMAX, N_QUANTILE)).astype(f32)
    set_to_min = (xq <= prm(P_QMIN, N_QUANTILE)).astype(f32)
    interpolate = ((set_to_min + set_to_max) < 0.01).astype(f32)
    interp_left = jnp.full_like(xq, -1e20)
    interp_right = jnp.full_like(xq, 1e20)
    left_count = jnp.zeros_like(xq)
    for b in range(N_QBOUND):                          # static unroll
        qb = prm(P_QB + b * N_QUANTILE, N_QUANTILE)    # (2, 1), implicit bcast
        ge = xq >= qb
        interp_left = jnp.maximum(interp_left, jnp.where(ge, qb, -1e20))
        interp_right = jnp.minimum(interp_right, jnp.where(ge, 1e20, qb))
        left_count = left_count + ge.astype(f32)
    interp_vals = ((left_count - one)
                   + (xq - interp_left) / (interp_right + EPS - interp_left)) \
        * prm(P_Q_INV_NUM, N_QUANTILE)
    o_ref[O_Q:O_Q + N_QUANTILE, :] = clip_out(
        (set_to_max + interpolate * interp_vals) * nm(xq))

    # ---- CONTINUOUS_ACTION: rescale to [-1+eps, 1-eps] -----------------------
    xa = x_ref[R_CA:R_CA + N_CACTION, :]
    ca = (xa - prm(P_CA_MIN_SERV, N_CACTION)) * prm(P_CA_SCALE, N_CACTION) \
        + prm(P_CA_MIN_TRAIN, N_CACTION)
    o_ref[O_CA:O_CA + N_CACTION, :] = clip_out(
        jnp.clip(ca, -1.0 + EPS, 1.0 - EPS) * nm(xa))


def _round_up(x, m):
    return ((x + m - 1) // m) * m


@jax.jit
def preprocessor_forward_feature_major(xt, param_slab):
    """Fast path: xt is feature-major (F_IN, N) f32 -> (F_OUT, N) f32.

    One HBM read of the input + one HBM write of the output, lane-dense blocks.
    """
    _, n = xt.shape
    n_eff = n
    if n < 128:                                        # tiny batch: one vreg width
        xt = jnp.pad(xt, ((0, 0), (0, 128 - n)))
        n_eff = 128

    # Tile: as large as possible (amortize per-step overhead), but
    #   * capped at TILE_MAX (double-buffered VMEM ~10 MiB, fits v5e default),
    #   * a multiple of 128 lanes not exceeding the array,
    #   * >= 2 grid steps once n >= 256 so v7x can use both TensorCores.
    half = _round_up((n_eff + 1) // 2, 128)
    tile = max(128, min(TILE_MAX, (n_eff // 128) * 128, half))
    grid = (pl.cdiv(n_eff, tile),)                     # partial edge block is masked

    out = pl.pallas_call(
        preprocessor_kernel,
        out_shape=jax.ShapeDtypeStruct((F_OUT, n_eff), jnp.float32),
        grid=grid,
        in_specs=[
            pl.BlockSpec((F_IN, tile), lambda i: (0, i)),
            pl.BlockSpec((P_ROWS, 1), lambda i: (0, 0)),
        ],
        out_specs=pl.BlockSpec((F_OUT, tile), lambda i: (0, i)),
        compiler_params=pltpu.CompilerParams(
            dimension_semantics=("parallel",),
            vmem_limit_bytes=32 * 1024 * 1024),
    )(xt, param_slab)

    if n_eff != n:
        out = out[:, :n]
    return out


@jax.jit
def preprocessor_forward(x, param_slab):
    """Module-compatible interface: x (N, F_IN) -> (N, F_OUT).

    NOTE: the two boundary transposes here add two full HBM passes around a
    kernel that otherwise does one read + one write; producers that can emit
    feature-major data should call preprocessor_forward_feature_major directly.
    """
    xt = jnp.transpose(x.astype(jnp.float32))
    return jnp.transpose(preprocessor_forward_feature_major(xt, param_slab))


def build_params():
    """Synthetic normalization parameters (same values as the reference spec)."""
    f32 = jnp.float32
    cont_means = jnp.array([[0.5, -1.0, 2.0, 0.0]], f32)
    cont_stddevs = jnp.array([[1.0, 2.0, 0.5, 1.5]], f32)
    bc_shifts = jnp.array([[1.0, 2.0]], f32)
    bc_lambdas = jnp.array([[0.5, -0.5]], f32)
    bc_means = jnp.array([[0.0, 1.0]], f32)
    bc_stddevs = jnp.array([[1.0, 2.0]], f32)
    enum_values = jnp.array([[0.0, 1.0, 2.0, 3.0]], f32)
    q_bounds = jnp.array([[0.0, 0.0],
                          [1.0, 2.0],
                          [2.0, 4.0],
                          [3.0, 6.0],
                          [4.0, 8.0]], f32)             # (N_QBOUND, N_QUANTILE)
    q_max = q_bounds[-1:, :]
    q_min = q_bounds[:1, :]
    q_num = jnp.full((1, N_QUANTILE), float(N_QBOUND - 1), f32)
    ca_min_value = jnp.array([[-2.0, 0.0]], f32)
    ca_max_value = jnp.array([[2.0, 10.0]], f32)
    ca_min_serving = ca_min_value
    ca_min_training = jnp.full((1, N_CACTION), -1.0 + EPS, f32)
    ca_scaling = (1.0 - EPS) * 2.0 / (ca_max_value - ca_min_value)
    return (cont_means, cont_stddevs, bc_shifts, bc_lambdas, bc_means,
            bc_stddevs, enum_values, q_bounds, q_max, q_min, q_num,
            ca_min_serving, ca_min_training, ca_scaling)


def pack_param_slab(params):
    """Pack all per-feature parameters (and their reciprocals) into one slab."""
    (cont_means, cont_stddevs, bc_shifts, bc_lambdas, bc_means, bc_stddevs,
     enum_values, q_bounds, q_max, q_min, q_num,
     ca_min_serving, ca_min_training, ca_scaling) = params
    rows = jnp.concatenate([
        cont_means.reshape(-1), bc_means.reshape(-1),            # P_CB_MEAN
        (1.0 / cont_stddevs).reshape(-1),
        (1.0 / bc_stddevs).reshape(-1),                          # P_CB_INV_STD
        bc_shifts.reshape(-1),
        bc_lambdas.reshape(-1),
        (1.0 / bc_lambdas).reshape(-1),
        enum_values.reshape(-1),
        q_bounds.reshape(-1),            # row-major: b * N_QUANTILE + f
        q_max.reshape(-1),
        q_min.reshape(-1),
        (1.0 / q_num).reshape(-1),
        ca_min_serving.reshape(-1),
        ca_min_training.reshape(-1),
        ca_scaling.reshape(-1),
    ])
    assert rows.shape[0] == P_ROWS
    return rows.reshape(P_ROWS, 1).astype(jnp.float32)


def reference_forward(x, params):
    """Pure-JAX replica of Preprocessor.forward (torch-style quantile math)."""
    (cont_means, cont_stddevs, bc_shifts, bc_lambdas, bc_means, bc_stddevs,
     enum_values, q_bounds, q_max, q_min, q_num,
     ca_min_serving, ca_min_training, ca_scaling) = params
    f32 = jnp.float32
    nm = (x != MISSING_VALUE).astype(f32)
    c = 0
    outs = []
    xb = x[:, c:c + N_BINARY]
    outs.append((xb != 0.0).astype(f32) * nm[:, c:c + N_BINARY]); c += N_BINARY
    xp = jnp.clip(x[:, c:c + N_PROB], 0.01, 0.99)
    outs.append((-jnp.log(1.0 / xp - 1.0)) * nm[:, c:c + N_PROB]); c += N_PROB
    xc = x[:, c:c + N_CONT]
    outs.append(jnp.clip((xc - cont_means) / cont_stddevs, -3.0, 3.0)
                * nm[:, c:c + N_CONT]); c += N_CONT
    xbc = x[:, c:c + N_BOXCOX]
    shifted = jnp.maximum(xbc + bc_shifts, 1e-6)
    boxcox = (jnp.exp(bc_lambdas * jnp.log(shifted)) - 1.0) / bc_lambdas
    outs.append(jnp.clip((boxcox - bc_means) / bc_stddevs, -3.0, 3.0)
                * nm[:, c:c + N_BOXCOX]); c += N_BOXCOX
    xe = x[:, c:c + 1]
    outs.append((xe == enum_values).astype(f32) * nm[:, c:c + 1]); c += 1
    xq = x[:, c:c + N_QUANTILE]
    qb3 = jnp.transpose(q_bounds)[None, :, :]                   # (1, F_q, B)
    exp_in = xq[:, :, None] * jnp.ones_like(qb3)
    ge = (exp_in >= qb3).astype(f32)
    lt = (exp_in < qb3).astype(f32)
    set_to_max = (xq >= q_max).astype(f32)
    set_to_min = (xq <= q_min).astype(f32)
    interpolate = ((set_to_min + set_to_max) < 0.01).astype(f32)
    interp_left = jnp.max(ge * qb3 + lt * (-1e20), axis=2)
    interp_right = jnp.min(lt * qb3 + ge * (1e20), axis=2)
    left_start = jnp.sum(ge, axis=2) - 1.0
    interp_vals = (left_start + (xq - interp_left)
                   / (interp_right + EPS - interp_left)) / q_num
    outs.append((set_to_max + interpolate * interp_vals)
                * nm[:, c:c + N_QUANTILE]); c += N_QUANTILE
    xa = x[:, c:c + N_CACTION]
    ca = (xa - ca_min_serving) * ca_scaling + ca_min_training
    outs.append(jnp.clip(ca, -1.0 + EPS, 1.0 - EPS) * nm[:, c:c + N_CACTION])
    return jnp.clip(jnp.concatenate(outs, axis=1),
                    MIN_FEATURE_VALUE, MAX_FEATURE_VALUE)


def make_input(key, n):
    kb, kp, kc, kx, ke, kq, ka, km = jax.random.split(key, 8)
    xb = jax.random.bernoulli(kb, 0.5, (n, N_BINARY)).astype(jnp.float32)
    xp = jax.random.uniform(kp, (n, N_PROB), minval=0.02, maxval=0.98)
    xc = (jax.random.normal(kc, (n, N_CONT))
          * jnp.array([1.0, 2.0, 0.5, 1.5]) + jnp.array([0.5, -1.0, 2.0, 0.0]))
    xbc = jax.random.uniform(kx, (n, N_BOXCOX), minval=0.5, maxval=5.0)
    xe = jax.random.randint(ke, (n, 1), 0, N_ENUM_VALUES).astype(jnp.float32)
    xq = jax.random.uniform(kq, (n, N_QUANTILE), minval=-1.0, maxval=9.0)
    xa = jax.random.uniform(ka, (n, N_CACTION), minval=-2.0, maxval=10.0)
    x = jnp.concatenate([xb, xp, xc, xbc, xe, xq, xa], axis=1).astype(jnp.float32)
    # sprinkle MISSING_VALUE entries to exercise the not-missing mask
    miss = jax.random.bernoulli(km, 0.05, x.shape)
    return jnp.where(miss, MISSING_VALUE, x)


if __name__ == "__main__":
    params = build_params()
    slab = pack_param_slab(params)
    key = jax.random.PRNGKey(0)
    k1, k2 = jax.random.split(key)

    # small batch (n < 128 path) through the module-compatible (N, F) wrapper
    x_small = make_input(k1, 8)
    out_small = jax.block_until_ready(preprocessor_forward(x_small, slab))
    np.testing.assert_allclose(np.asarray(out_small),
                               np.asarray(reference_forward(x_small, params)),
                               rtol=1e-4, atol=1e-4)

    # larger batch through the feature-major fast path: exercises a 2-step
    # grid with a masked partial edge block (1300 is not a tile multiple).
    x_big = make_input(k2, 1300)
    out_big_fm = jax.block_until_ready(
        preprocessor_forward_feature_major(jnp.transpose(x_big), slab))
    np.testing.assert_allclose(np.asarray(jnp.transpose(out_big_fm)),
                               np.asarray(reference_forward(x_big, params)),
                               rtol=1e-4, atol=1e-4)

    # TODO(synk): _check_preprocessing_output's runtime range-check exceptions and
    # the typed_output FeatureVector wrapping are host-side control flow with no
    # kernel equivalent; they are intentionally omitted.
    print("KERNEL_OK")
</pallas_src>

<mosaic_0001>
module attributes {stable_mosaic.version = 11 : i64} {
  func.func @preprocessor_kernel(%arg0: i32, %arg1: memref<15x128xf32, #tpu.memory_space<vmem>>, %arg2: memref<44x1xf32, #tpu.memory_space<vmem>>, %arg3: memref<18x128xf32, #tpu.memory_space<vmem>>) attributes {dimension_semantics = [#tpu.dimension_semantics<parallel>], iteration_bounds = array<i64: 1>, scalar_prefetch = 0 : i64, scratch_operands = 0 : i64, tpu.core_type = #tpu.core_type<tc>, window_params = [{transform_indices = @transform_0, window_bounds = array<i64: 15, 128>}, {pipeline_mode = #tpu.pipeline_mode<synchronous>, transform_indices = @transform_1, window_bounds = array<i64: 44, 1>}, {transform_indices = @transform_2, window_bounds = array<i64: 18, 128>}]} {
    %c0 = arith.constant 0 : index
    %c0_0 = arith.constant 0 : index
    %0 = vector.load %arg2[%c0, %c0_0] : memref<44x1xf32, #tpu.memory_space<vmem>>, vector<44x1xf32>
    %c0_1 = arith.constant 0 : index
    %c0_2 = arith.constant 0 : index
    %1 = vector.load %arg1[%c0_1, %c0_2] : memref<15x128xf32, #tpu.memory_space<vmem>>, vector<2x128xf32>
    %cst = arith.constant 0.000000e+00 : f32
    %2 = vector.broadcast %cst : f32 to vector<2x128xf32>
    %3 = arith.cmpf one, %1, %2 : vector<2x128xf32>
    %4 = arith.extui %3 : vector<2x128xi1> to vector<2x128xi32>
    %5 = arith.sitofp %4 : vector<2x128xi32> to vector<2x128xf32>
    %cst_3 = arith.constant -1.337000e+03 : f32
    %6 = vector.broadcast %cst_3 : f32 to vector<2x128xf32>
    %7 = arith.cmpf one, %1, %6 : vector<2x128xf32>
    %8 = arith.extui %7 : vector<2x128xi1> to vector<2x128xi32>
    %9 = arith.sitofp %8 : vector<2x128xi32> to vector<2x128xf32>
    %10 = arith.mulf %5, %9 : vector<2x128xf32>
    %cst_4 = arith.constant -6.000000e+00 : f32
    %cst_5 = arith.constant 6.000000e+00 : f32
    %11 = vector.broadcast %cst_4 : f32 to vector<2x128xf32>
    %12 = arith.maximumf %11, %10 : vector<2x128xf32>
    %13 = vector.broadcast %cst_5 : f32 to vector<2x128xf32>
    %14 = arith.minimumf %13, %12 : vector<2x128xf32>
    %c0_6 = arith.constant 0 : index
    %c0_7 = arith.constant 0 : index
    %15 = vector.load %arg3[%c0_6, %c0_7] : memref<18x128xf32, #tpu.memory_space<vmem>>, vector<2x128xf32>
    tpu.vector_store %arg3[%c0_6, %c0_7], %14 {strides = array<i32>} : memref<18x128xf32, #tpu.memory_space<vmem>>, vector<2x128xf32>,
    %c2 = arith.constant 2 : index
    %c0_8 = arith.constant 0 : index
    %16 = vector.load %arg1[%c2, %c0_8] : memref<15x128xf32, #tpu.memory_space<vmem>>, vector<2x128xf32>
    %cst_9 = arith.constant 0.00999999977 : f32
    %cst_10 = arith.constant 9.900000e-01 : f32
    %17 = vector.broadcast %cst_9 : f32 to vector<2x128xf32>
    %18 = arith.maximumf %17, %16 : vector<2x128xf32>
    %19 = vector.broadcast %cst_10 : f32 to vector<2x128xf32>
    %20 = arith.minimumf %19, %18 : vector<2x128xf32>
    %cst_11 = arith.constant 1.000000e+00 : f32
    %21 = vector.broadcast %cst_11 : f32 to vector<2x128xf32>
    %22 = arith.divf %21, %20 : vector<2x128xf32>
    %cst_12 = arith.constant 1.000000e+00 : f32
    %23 = vector.broadcast %cst_12 : f32 to vector<2x128xf32>
    %24 = arith.subf %22, %23 : vector<2x128xf32>
    %25 = math.log %24 : vector<2x128xf32>
    %cst_13 = arith.constant 0.000000e+00 : f32
    %26 = vector.broadcast %cst_13 : f32 to vector<2x128xf32>
    %27 = arith.subf %26, %25 : vector<2x128xf32>
    %cst_14 = arith.constant -1.337000e+03 : f32
    %28 = vector.broadcast %cst_14 : f32 to vector<2x128xf32>
    %29 = arith.cmpf one, %16, %28 : vector<2x128xf32>
    %30 = arith.extui %29 : vector<2x128xi1> to vector<2x128xi32>
    %31 = arith.sitofp %30 : vector<2x128xi32> to vector<2x128xf32>
    %32 = arith.mulf %27, %31 : vector<2x128xf32>
    %cst_15 = arith.constant -6.000000e+00 : f32
    %cst_16 = arith.constant 6.000000e+00 : f32
    %33 = vector.broadcast %cst_15 : f32 to vector<2x128xf32>
    %34 = arith.maximumf %33, %32 : vector<2x128xf32>
    %35 = vector.broadcast %cst_16 : f32 to vector<2x128xf32>
    %36 = arith.minimumf %35, %34 : vector<2x128xf32>
    %c2_17 = arith.constant 2 : index
    %c0_18 = arith.constant 0 : index
    %37 = vector.load %arg3[%c2_17, %c0_18] : memref<18x128xf32, #tpu.memory_space<vmem>>, vector<2x128xf32>
    tpu.vector_store %arg3[%c2_17, %c0_18], %36 {strides = array<i32>} : memref<18x128xf32, #tpu.memory_space<vmem>>, vector<2x128xf32>,
    %c4 = arith.constant 4 : index
    %c0_19 = arith.constant 0 : index
    %38 = vector.load %arg1[%c4, %c0_19] : memref<15x128xf32, #tpu.memory_space<vmem>>, vector<6x128xf32>
    %39 = vector.extract_strided_slice %38 {offsets = [4, 0], sizes = [2, 128], strides = [1, 1]} : vector<6x128xf32> to vector<2x128xf32>
    %40 = vector.extract_strided_slice %0 {offsets = [12, 0], sizes = [2, 1], strides = [1, 1]} : vector<44x1xf32> to vector<2x1xf32>
    %41 = vector.broadcast %40 : vector<2x1xf32> to vector<2x128xf32>
    %42 = arith.addf %39, %41 : vector<2x128xf32>
    %cst_20 = arith.constant 9.99999997E-7 : f32
    %43 = vector.broadcast %cst_20 : f32 to vector<2x128xf32>
    %44 = arith.maximumf %42, %43 : vector<2x128xf32>
    %45 = vector.extract_strided_slice %0 {offsets = [14, 0], sizes = [2, 1], strides = [1, 1]} : vector<44x1xf32> to vector<2x1xf32>
    %46 = math.log %44 : vector<2x128xf32>
    %47 = vector.broadcast %45 : vector<2x1xf32> to vector<2x128xf32>
    %48 = arith.mulf %47, %46 : vector<2x128xf32>
    %49 = math.exp %48 : vector<2x128xf32>
    %cst_21 = arith.constant 1.000000e+00 : f32
    %50 = vector.broadcast %cst_21 : f32 to vector<2x128xf32>
    %51 = arith.subf %49, %50 : vector<2x128xf32>
    %52 = vector.extract_strided_slice %0 {offsets = [16, 0], sizes = [2, 1], strides = [1, 1]} : vector<44x1xf32> to vector<2x1xf32>
    %53 = vector.broadcast %52 : vector<2x1xf32> to vector<2x128xf32>
    %54 = arith.mulf %51, %53 : vector<2x128xf32>
    %55 = vector.extract_strided_slice %38 {offsets = [0, 0], sizes = [4, 128], strides = [1, 1]} : vector<6x128xf32> to vector<4x128xf32>
    %56 = tpu.concatenate %55, %54 in 0 : vector<4x128xf32>, vector<2x128xf32> -> vector<6x128xf32>
    %57 = vector.extract_strided_slice %0 {offsets = [0, 0], sizes = [6, 1], strides = [1, 1]} : vector<44x1xf32> to vector<6x1xf32>
    %58 = vector.broadcast %57 : vector<6x1xf32> to vector<6x128xf32>
    %59 = arith.subf %56, %58 : vector<6x128xf32>
    %60 = vector.extract_strided_slice %0 {offsets = [6, 0], sizes = [6, 1], strides = [1, 1]} : vector<44x1xf32> to vector<6x1xf32>
    %61 = vector.broadcast %60 : vector<6x1xf32> to vector<6x128xf32>
    %62 = arith.mulf %59, %61 : vector<6x128xf32>
    %cst_22 = arith.constant -3.000000e+00 : f32
    %cst_23 = arith.constant 3.000000e+00 : f32
    %63 = vector.broadcast %cst_22 : f32 to vector<6x128xf32>
    %64 = arith.maximumf %63, %62 : vector<6x128xf32>
    %65 = vector.broadcast %cst_23 : f32 to vector<6x128xf32>
    %66 = arith.minimumf %65, %64 : vector<6x128xf32>
    %cst_24 = arith.constant -1.337000e+03 : f32
    %67 = vector.broadcast %cst_24 : f32 to vector<6x128xf32>
    %68 = arith.cmpf one, %38, %67 : vector<6x128xf32>
    %69 = arith.extui %68 : vector<6x128xi1> to vector<6x128xi32>
    %70 = arith.sitofp %69 : vector<6x128xi32> to vector<6x128xf32>
    %71 = arith.mulf %66, %70 : vector<6x128xf32>
    %cst_25 = arith.constant -6.000000e+00 : f32
    %cst_26 = arith.constant 6.000000e+00 : f32
    %72 = vector.broadcast %cst_25 : f32 to vector<6x128xf32>
    %73 = arith.maximumf %72, %71 : vector<6x128xf32>
    %74 = vector.broadcast %cst_26 : f32 to vector<6x128xf32>
    %75 = arith.minimumf %74, %73 : vector<6x128xf32>
    %c4_27 = arith.constant 4 : index
    %c0_28 = arith.constant 0 : index
    %76 = vector.load %arg3[%c4_27, %c0_28] : memref<18x128xf32, #tpu.memory_space<vmem>>, vector<6x128xf32>
    tpu.vector_store %arg3[%c4_27, %c0_28], %75 {strides = array<i32>} : memref<18x128xf32, #tpu.memory_space<vmem>>, vector<6x128xf32>,
    %c10 = arith.constant 10 : index
    %c0_29 = arith.constant 0 : index
    %77 = vector.load %arg1[%c10, %c0_29] : memref<15x128xf32, #tpu.memory_space<vmem>>, vector<1x128xf32>
    %78 = vector.extract_strided_slice %0 {offsets = [18, 0], sizes = [4, 1], strides = [1, 1]} : vector<44x1xf32> to vector<4x1xf32>
    %79 = vector.broadcast %77 : vector<1x128xf32> to vector<4x128xf32>
    %80 = vector.broadcast %78 : vector<4x1xf32> to vector<4x128xf32>
    %81 = arith.cmpf oeq, %79, %80 : vector<4x128xf32>
    %82 = arith.extui %81 : vector<4x128xi1> to vector<4x128xi32>
    %83 = arith.sitofp %82 : vector<4x128xi32> to vector<4x128xf32>
    %cst_30 = arith.constant -1.337000e+03 : f32
    %84 = vector.broadcast %cst_30 : f32 to vector<1x128xf32>
    %85 = arith.cmpf one, %77, %84 : vector<1x128xf32>
    %86 = arith.extui %85 : vector<1x128xi1> to vector<1x128xi32>
    %87 = arith.sitofp %86 : vector<1x128xi32> to vector<1x128xf32>
    %88 = vector.broadcast %87 : vector<1x128xf32> to vector<4x128xf32>
    %89 = arith.mulf %83, %88 : vector<4x128xf32>
    %cst_31 = arith.constant -6.000000e+00 : f32
    %cst_32 = arith.constant 6.000000e+00 : f32
    %90 = vector.broadcast %cst_31 : f32 to vector<4x128xf32>
    %91 = arith.maximumf %90, %89 : vector<4x128xf32>
    %92 = vector.broadcast %cst_32 : f32 to vector<4x128xf32>
    %93 = arith.minimumf %92, %91 : vector<4x128xf32>
    %c10_33 = arith.constant 10 : index
    %c0_34 = arith.constant 0 : index
    %94 = vector.load %arg3[%c10_33, %c0_34] : memref<18x128xf32, #tpu.memory_space<vmem>>, vector<4x128xf32>
    tpu.vector_store %arg3[%c10_33, %c0_34], %93 {strides = array<i32>} : memref<18x128xf32, #tpu.memory_space<vmem>>, vector<4x128xf32>,
    %c11 = arith.constant 11 : index
    %c0_35 = arith.constant 0 : index
    %95 = vector.load %arg1[%c11, %c0_35] : memref<15x128xf32, #tpu.memory_space<vmem>>, vector<2x128xf32>
    %96 = vector.extract_strided_slice %0 {offsets = [32, 0], sizes = [2, 1], strides = [1, 1]} : vector<44x1xf32> to vector<2x1xf32>
    %97 = vector.broadcast %96 : vector<2x1xf32> to vector<2x128xf32>
    %98 = arith.cmpf oge, %95, %97 : vector<2x128xf32>
    %99 = arith.extui %98 : vector<2x128xi1> to vector<2x128xi32>
    %100 = arith.sitofp %99 : vector<2x128xi32> to vector<2x128xf32>
    %101 = vector.extract_strided_slice %0 {offsets = [34, 0], sizes = [2, 1], strides = [1, 1]} : vector<44x1xf32> to vector<2x1xf32>
    %102 = vector.broadcast %101 : vector<2x1xf32> to vector<2x128xf32>
    %103 = arith.cmpf ole, %95, %102 : vector<2x128xf32>
    %104 = arith.extui %103 : vector<2x128xi1> to vector<2x128xi32>
    %105 = arith.sitofp %104 : vector<2x128xi32> to vector<2x128xf32>
    %106 = arith.addf %105, %100 : vector<2x128xf32>
    %cst_36 = arith.constant 0.00999999977 : f32
    %107 = vector.broadcast %cst_36 : f32 to vector<2x128xf32>
    %108 = arith.cmpf olt, %106, %107 : vector<2x128xf32>
    %109 = arith.extui %108 : vector<2x128xi1> to vector<2x128xi32>
    %110 = arith.sitofp %109 : vector<2x128xi32> to vector<2x128xf32>
    %cst_37 = arith.constant -1.000000e+20 : f32
    %111 = vector.broadcast %cst_37 : f32 to vector<2x128xf32>
    %cst_38 = arith.constant 1.000000e+20 : f32
    %112 = vector.broadcast %cst_38 : f32 to vector<2x128xf32>
    %cst_39 = arith.constant 0.000000e+00 : f32
    %113 = vector.broadcast %cst_39 : f32 to vector<2x128xf32>
    %114 = vector.extract_strided_slice %0 {offsets = [22, 0], sizes = [2, 1], strides = [1, 1]} : vector<44x1xf32> to vector<2x1xf32>
    %115 = vector.broadcast %114 : vector<2x1xf32> to vector<2x128xf32>
    %116 = arith.cmpf oge, %95, %115 : vector<2x128xf32>
    %cst_40 = arith.constant -1.000000e+20 : f32
    %117 = vector.shape_cast %114 : vector<2x1xf32> to vector<2x1xf32>
    %118 = vector.broadcast %117 : vector<2x1xf32> to vector<2x128xf32>
    %119 = vector.broadcast %cst_40 : f32 to vector<2x128xf32>
    %120 = arith.select %116, %118, %119 : vector<2x128xi1>, vector<2x128xf32>
    %121 = arith.maximumf %111, %120 : vector<2x128xf32>
    %cst_41 = arith.constant 1.000000e+20 : f32
    %122 = vector.broadcast %cst_41 : f32 to vector<2x128xf32>
    %123 = vector.shape_cast %114 : vector<2x1xf32> to vector<2x1xf32>
    %124 = vector.broadcast %123 : vector<2x1xf32> to vector<2x128xf32>
    %125 = arith.select %116, %122, %124 : vector<2x128xi1>, vector<2x128xf32>
    %126 = arith.minimumf %112, %125 : vector<2x128xf32>
    %127 = arith.extui %116 : vector<2x128xi1> to vector<2x128xi32>
    %128 = arith.sitofp %127 : vector<2x128xi32> to vector<2x128xf32>
    %129 = arith.addf %113, %128 : vector<2x128xf32>
    %130 = vector.extract_strided_slice %0 {offsets = [24, 0], sizes = [2, 1], strides = [1, 1]} : vector<44x1xf32> to vector<2x1xf32>
    %131 = vector.broadcast %130 : vector<2x1xf32> to vector<2x128xf32>
    %132 = arith.cmpf oge, %95, %131 : vector<2x128xf32>
    %cst_42 = arith.constant -1.000000e+20 : f32
    %133 = vector.shape_cast %130 : vector<2x1xf32> to vector<2x1xf32>
    %134 = vector.broadcast %133 : vector<2x1xf32> to vector<2x128xf32>
    %135 = vector.broadcast %cst_42 : f32 to vector<2x128xf32>
    %136 = arith.select %132, %134, %135 : vector<2x128xi1>, vector<2x128xf32>
    %137 = arith.maximumf %121, %136 : vector<2x128xf32>
    %cst_43 = arith.constant 1.000000e+20 : f32
    %138 = vector.broadcast %cst_43 : f32 to vector<2x128xf32>
    %139 = vector.shape_cast %130 : vector<2x1xf32> to vector<2x1xf32>
    %140 = vector.broadcast %139 : vector<2x1xf32> to vector<2x128xf32>
    %141 = arith.select %132, %138, %140 : vector<2x128xi1>, vector<2x128xf32>
    %142 = arith.minimumf %126, %141 : vector<2x128xf32>
    %143 = arith.extui %132 : vector<2x128xi1> to vector<2x128xi32>
    %144 = arith.sitofp %143 : vector<2x128xi32> to vector<2x128xf32>
    %145 = arith.addf %129, %144 : vector<2x128xf32>
    %146 = vector.extract_strided_slice %0 {offsets = [26, 0], sizes = [2, 1], strides = [1, 1]} : vector<44x1xf32> to vector<2x1xf32>
    %147 = vector.broadcast %146 : vector<2x1xf32> to vector<2x128xf32>
    %148 = arith.cmpf oge, %95, %147 : vector<2x128xf32>
    %cst_44 = arith.constant -1.000000e+20 : f32
    %149 = vector.shape_cast %146 : vector<2x1xf32> to vector<2x1xf32>
    %150 = vector.broadcast %149 : vector<2x1xf32> to vector<2x128xf32>
    %151 = vector.broadcast %cst_44 : f32 to vector<2x128xf32>
    %152 = arith.select %148, %150, %151 : vector<2x128xi1>, vector<2x128xf32>
    %153 = arith.maximumf %137, %152 : vector<2x128xf32>
    %cst_45 = arith.constant 1.000000e+20 : f32
    %154 = vector.broadcast %cst_45 : f32 to vector<2x128xf32>
    %155 = vector.shape_cast %146 : vector<2x1xf32> to vector<2x1xf32>
    %156 = vector.broadcast %155 : vector<2x1xf32> to vector<2x128xf32>
    %157 = arith.select %148, %154, %156 : vector<2x128xi1>, vector<2x128xf32>
    %158 = arith.minimumf %142, %157 : vector<2x128xf32>
    %159 = arith.extui %148 : vector<2x128xi1> to vector<2x128xi32>
    %160 = arith.sitofp %159 : vector<2x128xi32> to vector<2x128xf32>
    %161 = arith.addf %145, %160 : vector<2x128xf32>
    %162 = vector.extract_strided_slice %0 {offsets = [28, 0], sizes = [2, 1], strides = [1, 1]} : vector<44x1xf32> to vector<2x1xf32>
    %163 = vector.broadcast %162 : vector<2x1xf32> to vector<2x128xf32>
    %164 = arith.cmpf oge, %95, %163 : vector<2x128xf32>
    %cst_46 = arith.constant -1.000000e+20 : f32
    %165 = vector.shape_cast %162 : vector<2x1xf32> to vector<2x1xf32>
    %166 = vector.broadcast %165 : vector<2x1xf32> to vector<2x128xf32>
    %167 = vector.broadcast %cst_46 : f32 to vector<2x128xf32>
    %168 = arith.select %164, %166, %167 : vector<2x128xi1>, vector<2x128xf32>
    %169 = arith.maximumf %153, %168 : vector<2x128xf32>
    %cst_47 = arith.constant 1.000000e+20 : f32
    %170 = vector.broadcast %cst_47 : f32 to vector<2x128xf32>
    %171 = vector.shape_cast %162 : vector<2x1xf32> to vector<2x1xf32>
    %172 = vector.broadcast %171 : vector<2x1xf32> to vector<2x128xf32>
    %173 = arith.select %164, %170, %172 : vector<2x128xi1>, vector<2x128xf32>
    %174 = arith.minimumf %158, %173 : vector<2x128xf32>
    %175 = arith.extui %164 : vector<2x128xi1> to vector<2x128xi32>
    %176 = arith.sitofp %175 : vector<2x128xi32> to vector<2x128xf32>
    %177 = arith.addf %161, %176 : vector<2x128xf32>
    %178 = vector.extract_strided_slice %0 {offsets = [30, 0], sizes = [2, 1], strides = [1, 1]} : vector<44x1xf32> to vector<2x1xf32>
    %179 = vector.broadcast %178 : vector<2x1xf32> to vector<2x128xf32>
    %180 = arith.cmpf oge, %95, %179 : vector<2x128xf32>
    %cst_48 = arith.constant -1.000000e+20 : f32
    %181 = vector.shape_cast %178 : vector<2x1xf32> to vector<2x1xf32>
    %182 = vector.broadcast %181 : vector<2x1xf32> to vector<2x128xf32>
    %183 = vector.broadcast %cst_48 : f32 to vector<2x128xf32>
    %184 = arith.select %180, %182, %183 : vector<2x128xi1>, vector<2x128xf32>
    %185 = arith.maximumf %169, %184 : vector<2x128xf32>
    %cst_49 = arith.constant 1.000000e+20 : f32
    %186 = vector.broadcast %cst_49 : f32 to vector<2x128xf32>
    %187 = vector.shape_cast %178 : vector<2x1xf32> to vector<2x1xf32>
    %188 = vector.broadcast %187 : vector<2x1xf32> to vector<2x128xf32>
    %189 = arith.select %180, %186, %188 : vector<2x128xi1>, vector<2x128xf32>
    %190 = arith.minimumf %174, %189 : vector<2x128xf32>
    %191 = arith.extui %180 : vector<2x128xi1> to vector<2x128xi32>
    %192 = arith.sitofp %191 : vector<2x128xi32> to vector<2x128xf32>
    %193 = arith.addf %177, %192 : vector<2x128xf32>
    %cst_50 = arith.constant 1.000000e+00 : f32
    %194 = vector.broadcast %cst_50 : f32 to vector<2x128xf32>
    %195 = arith.subf %193, %194 : vector<2x128xf32>
    %196 = arith.subf %95, %185 : vector<2x128xf32>
    %cst_51 = arith.constant 9.99999997E-7 : f32
    %197 = vector.broadcast %cst_51 : f32 to vector<2x128xf32>
    %198 = arith.addf %190, %197 : vector<2x128xf32>
    %199 = arith.subf %198, %185 : vector<2x128xf32>
    %200 = arith.divf %196, %199 : vector<2x128xf32>
    %201 = arith.addf %195, %200 : vector<2x128xf32>
    %202 = vector.extract_strided_slice %0 {offsets = [36, 0], sizes = [2, 1], strides = [1, 1]} : vector<44x1xf32> to vector<2x1xf32>
    %203 = vector.broadcast %202 : vector<2x1xf32> to vector<2x128xf32>
    %204 = arith.mulf %201, %203 : vector<2x128xf32>
    %205 = arith.mulf %110, %204 : vector<2x128xf32>
    %206 = arith.addf %100, %205 : vector<2x128xf32>
    %cst_52 = arith.constant -1.337000e+03 : f32
    %207 = vector.broadcast %cst_52 : f32 to vector<2x128xf32>
    %208 = arith.cmpf one, %95, %207 : vector<2x128xf32>
    %209 = arith.extui %208 : vector<2x128xi1> to vector<2x128xi32>
    %210 = arith.sitofp %209 : vector<2x128xi32> to vector<2x128xf32>
    %211 = arith.mulf %206, %210 : vector<2x128xf32>
    %cst_53 = arith.constant -6.000000e+00 : f32
    %cst_54 = arith.constant 6.000000e+00 : f32
    %212 = vector.broadcast %cst_53 : f32 to vector<2x128xf32>
    %213 = arith.maximumf %212, %211 : vector<2x128xf32>
    %214 = vector.broadcast %cst_54 : f32 to vector<2x128xf32>
    %215 = arith.minimumf %214, %213 : vector<2x128xf32>
    %c14 = arith.constant 14 : index
    %c0_55 = arith.constant 0 : index
    %216 = vector.load %arg3[%c14, %c0_55] : memref<18x128xf32, #tpu.memory_space<vmem>>, vector<2x128xf32>
    tpu.vector_store %arg3[%c14, %c0_55], %215 {strides = array<i32>} : memref<18x128xf32, #tpu.memory_space<vmem>>, vector<2x128xf32>,
    %c13 = arith.constant 13 : index
    %c0_56 = arith.constant 0 : index
    %217 = vector.load %arg1[%c13, %c0_56] : memref<15x128xf32, #tpu.memory_space<vmem>>, vector<2x128xf32>
    %218 = vector.extract_strided_slice %0 {offsets = [38, 0], sizes = [2, 1], strides = [1, 1]} : vector<44x1xf32> to vector<2x1xf32>
    %219 = vector.broadcast %218 : vector<2x1xf32> to vector<2x128xf32>
    %220 = arith.subf %217, %219 : vector<2x128xf32>
    %221 = vector.extract_strided_slice %0 {offsets = [42, 0], sizes = [2, 1], strides = [1, 1]} : vector<44x1xf32> to vector<2x1xf32>
    %222 = vector.broadcast %221 : vector<2x1xf32> to vector<2x128xf32>
    %223 = arith.mulf %220, %222 : vector<2x128xf32>
    %224 = vector.extract_strided_slice %0 {offsets = [40, 0], sizes = [2, 1], strides = [1, 1]} : vector<44x1xf32> to vector<2x1xf32>
    %225 = vector.broadcast %224 : vector<2x1xf32> to vector<2x128xf32>
    %226 = arith.addf %223, %225 : vector<2x128xf32>
    %cst_57 = arith.constant -0.999998986 : f32
    %cst_58 = arith.constant 0.999998986 : f32
    %227 = vector.broadcast %cst_57 : f32 to vector<2x128xf32>
    %228 = arith.maximumf %227, %226 : vector<2x128xf32>
    %229 = vector.broadcast %cst_58 : f32 to vector<2x128xf32>
    %230 = arith.minimumf %229, %228 : vector<2x128xf32>
    %cst_59 = arith.constant -1.337000e+03 : f32
    %231 = vector.broadcast %cst_59 : f32 to vector<2x128xf32>
    %232 = arith.cmpf one, %217, %231 : vector<2x128xf32>
    %233 = arith.extui %232 : vector<2x128xi1> to vector<2x128xi32>
    %234 = arith.sitofp %233 : vector<2x128xi32> to vector<2x128xf32>
    %235 = arith.mulf %230, %234 : vector<2x128xf32>
    %cst_60 = arith.constant -6.000000e+00 : f32
    %cst_61 = arith.constant 6.000000e+00 : f32
    %236 = vector.broadcast %cst_60 : f32 to vector<2x128xf32>
    %237 = arith.maximumf %236, %235 : vector<2x128xf32>
    %238 = vector.broadcast %cst_61 : f32 to vector<2x128xf32>
    %239 = arith.minimumf %238, %237 : vector<2x128xf32>
    %c16 = arith.constant 16 : index
    %c0_62 = arith.constant 0 : index
    %240 = vector.load %arg3[%c16, %c0_62] : memref<18x128xf32, #tpu.memory_space<vmem>>, vector<2x128xf32>
    tpu.vector_store %arg3[%c16, %c0_62], %239 {strides = array<i32>} : memref<18x128xf32, #tpu.memory_space<vmem>>, vector<2x128xf32>,
    return
  }
  func.func @transform_0(%arg0: i32) -> (i32, i32) {
    %c0_i32 = arith.constant 0 : i32
    %c0_i32_0 = arith.constant 0 : i32
    return %c0_i32, %arg0 : i32, i32
  }
  func.func @transform_1(%arg0: i32) -> (i32, i32) {
    %c0_i32 = arith.constant 0 : i32
    %c0_i32_0 = arith.constant 0 : i32
    %c0_i32_1 = arith.constant 0 : i32
    return %c0_i32, %c0_i32_0 : i32, i32
  }
  func.func @transform_2(%arg0: i32) -> (i32, i32) {
    %c0_i32 = arith.constant 0 : i32
    %c0_i32_0 = arith.constant 0 : i32
    return %c0_i32, %arg0 : i32, i32
  }
}

</mosaic_0001>

<llo_original>
// kernel: preprocessor_forward_feature_major.1
$region0: #{preprocessor_forward_feature_major.1}
  #allocation0 [shape = 'u32[]', space=smem, size = 0x4, offset = 0x4, fixed_abs, tag = 'smem constant byte address 0x4 - core index']
  #allocation1 [shape = 'u32[144,128]{1,0:T(1,128)}', space=vmem, size = 0x12000, scoped, tag = 'internal scratch']
  %s0 = inlined_call_operand.vmem [shape: f32[15,128], index: 0, kind: input, shape index: {}]
  %s1 = inlined_call_operand.vmem [shape: f32[44,1], index: 1, kind: input, shape index: {}]
  %s2 = inlined_call_operand.vmem [shape: f32[18,128], index: 2, kind: output, shape index: {}]
  %s3 = sld [smem:[#allocation0]]
  $region18: #{preprocessor_forward_feature_major.1} parent=0
    _
  %s5 = ssub.s32 1, %s3
  %s6 = scalar_select 0, %s5, %s3
  // Predicated region
  $region2: #{preprocessor_forward_feature_major.1} parent=0 // pred_check
    _
  $region3: #{preprocessor_forward_feature_major.1} parent=0 // pred_check_branch
    %8 = sbr.rel (0) target = $region5
  $region4: #{preprocessor_forward_feature_major.1} parent=0 // pred_region
    _
  $region5: #{preprocessor_forward_feature_major.1} parent=0 // pred_fallthru
    _
  // Predicated region
  $region6: #{preprocessor_forward_feature_major.1} parent=0 // pred_check
    _
  $region7: #{preprocessor_forward_feature_major.1} parent=0 // pred_check_branch
    %10 = sbr.rel (0) target = $region9
  $region8: #{preprocessor_forward_feature_major.1} parent=0 // pred_region
    _
  $region9: #{preprocessor_forward_feature_major.1} parent=0 // pred_fallthru
    _
  %v11 = vld [vmem:[%s1] sm:$0xff]
  %v12 = vld [vmem:[%s1 + $0x8] sm:$0xff]
  %v13 = vld [vmem:[%s1 + $0x10] sm:$0xff]
  %v14 = vld [vmem:[%s1 + $0x18] sm:$0xff]
  %v15 = vld [vmem:[%s1 + $0x20] sm:$0xff]
  %v16 = vld [vmem:[%s1 + $0x28] sm:$0xf]
  %v17 = vld [vmem:[%s0] sm:$0x3]
  %vm18 = vcmp.ne.f32.partialorder %v17, 0.0
  %v19 = vsel %vm18, 1, 0
  %v20 = vcvt.s32.f32 %v19
  %vm21 = vcmp.ne.f32.partialorder %v17, -1337.0
  %v22 = vsel %vm21, 1, 0
  %v23 = vcvt.s32.f32 %v22
  %v24 = vmul.f32 %v20, %v23
  %v25 = vmax.f32 %v24, -6.0
  %v26 = vmin.f32 %v25, 6.0
  %27 = vst [vmem:[%s2] sm:$0x3] %v26
  %v28 = vld [vmem:[%s0 + $0x2] sm:$0x3]
  %v29 = vmax.f32 %v28, 0.01
  %v30 = vmin.f32 %v29, 0.99
  %v31 = vrcp.pop %v30
  %v32 = vmul.f32 1.0, %v31
  %v33 = vsub.f32 %v32, 1.0
  %v34 = vlog2.pop %v33
  %v35 = vmul.f32 %v34, 0.6931472
  %v36 = vsub.f32 0.0, %v35
  %vm37 = vcmp.ne.f32.partialorder %v28, -1337.0
  %v38 = vsel %vm37, 1, 0
  %v39 = vcvt.s32.f32 %v38
  %v40 = vmul.f32 %v36, %v39
  %v41 = vmax.f32 %v40, -6.0
  %v42 = vmin.f32 %v41, 6.0
  %43 = vst [vmem:[%s2 + $0x2] sm:$0x3] %v42
  %v44 = vld [vmem:[%s0 + $0x4] sm:$0x3f]
  %46 = vset.pattern.permute.xlu0 0
  %47 = vperm.xlu0 %46, %v12
  %v48 = vpop.permute.xlu0 %47
  %v50 = vadd.f32 %v44, %v48
  %v51 = vmax.f32 %v50, 1e-06
  %v52 = vlog2.pop %v51
  %v53 = vmul.f32 %v52, 0.6931472
  %v55 = vrot.slane %v53, 6
  %v57 = vmul.f32 %v48, %v55
  %v58 = vmul.f32 %v57, 1.442695
  %v59 = vpow.pop %v58
  %v60 = vsub.f32 %v59, 1.0
  %62 = vset.pattern.permute.xlu0 0
  %63 = vperm.xlu0 %62, %v13
  %v64 = vpop.permute.xlu0 %63
  %v65 = vrot.slane %v64, 2
  %v67 = vmul.f32 %v60, %v65
  %v69 = vrot.slane %v67, 2
  %vm71 = vcmask 1043456
  %v72 = vsel %vm71, %v44, %v69
  %74 = vset.pattern.permute.xlu0 0
  %75 = vperm.xlu0 %74, %v11
  %v76 = vpop.permute.xlu0 %75
  %v78 = vsub.f32 %v72, %v76
  %vm79 = vcmask 1041408
  %v80 = vrot.slane %v76, 6
  %v81 = vrot.slane %v48, 6
  %v82 = vsel %vm79, %v80, %v81
  %v84 = vmul.f32 %v78, %v82
  %v85 = vmax.f32 %v84, -3.0
  %v86 = vmin.f32 %v85, 3.0
  %vm87 = vcmp.ne.f32.partialorder %v44, -1337.0
  %v88 = vsel %vm87, 1, 0
  %v89 = vcvt.s32.f32 %v88
  %v90 = vmul.f32 %v86, %v89
  %v91 = vmax.f32 %v90, -6.0
  %v92 = vmin.f32 %v91, 6.0
  %93 = vst [vmem:[%s2 + $0x4] sm:$0x3f] %v92
  %v94 = vld [vmem:[%s0 + $0xa] sm:$0x1]
  %v95 = vlaneseq
  %v96 = vshrl.u32 %v95, 7
  %v97 = vsub.s32 0, %v96
  %v98 = vrot.slane %v94, %v97
  %vm100 = vcmp.eq.f32.partialorder %v98, %v64
  %v101 = vsel %vm100, 1, 0
  %v102 = vcvt.s32.f32 %v101
  %vm103 = vcmp.ne.f32.partialorder %v94, -1337.0
  %v104 = vsel %vm103, 1, 0
  %v105 = vcvt.s32.f32 %v104
  %v106 = vlaneseq
  %v107 = vshrl.u32 %v106, 7
  %v108 = vsub.s32 0, %v107
  %v109 = vrot.slane %v105, %v108
  %v110 = vmul.f32 %v102, %v109
  %v111 = vmax.f32 %v110, -6.0
  %v112 = vmin.f32 %v111, 6.0
  %113 = vst [vmem:[%s2 + $0x8] sm:$0x3c] %v112
  %v114 = vld [vmem:[%s0 + $0xb] sm:$0x3]
  %116 = vset.pattern.permute.xlu0 0
  %117 = vperm.xlu0 %116, %v15
  %v118 = vpop.permute.xlu0 %117
  %vm120 = vcmp.ge.f32.partialorder %v114, %v118
  %v121 = vsel %vm120, 1, 0
  %v122 = vcvt.s32.f32 %v121
  %v123 = vrot.slane %v118, 2
  %vm125 = vcmp.le.f32.partialorder %v114, %v123
  %v126 = vsel %vm125, 1, 0
  %v127 = vcvt.s32.f32 %v126
  %v128 = vadd.f32 %v127, %v122
  %vm129 = vcmp.lt.f32.partialorder %v128, 0.01
  %v130 = vsel %vm129, 1, 0
  %v131 = vcvt.s32.f32 %v130
  %v132 = vrot.slane %v64, 6
  %vm134 = vcmp.ge.f32.partialorder %v114, %v132
  %v135 = vsel %vm134, %v132, -1e+20
  %v136 = vmax.f32 %v135, -1e+20
  %v137 = vsel %vm134, 1e+20, %v132
  %v138 = vmin.f32 %v137, 1e+20
  %v139 = vsel %vm134, 1, 0
  %v140 = vcvt.s32.f32 %v139
  %v141 = vadd.f32 %v140, 0.0
  %143 = vset.pattern.permute.xlu0 0
  %144 = vperm.xlu0 %143, %v14
  %v145 = vpop.permute.xlu0 %144
  %vm147 = vcmp.ge.f32.partialorder %v114, %v145
  %v148 = vsel %vm147, %v145, -1e+20
  %v149 = vmax.f32 %v136, %v148
  %v150 = vsel %vm147, 1e+20, %v145
  %v151 = vmin.f32 %v138, %v150
  %v152 = vsel %vm147, 1, 0
  %v153 = vcvt.s32.f32 %v152
  %v154 = vadd.f32 %v141, %v153
  %v155 = vrot.slane %v145, 2
  %vm157 = vcmp.ge.f32.partialorder %v114, %v155
  %v158 = vsel %vm157, %v155, -1e+20
  %v159 = vmax.f32 %v149, %v158
  %v160 = vsel %vm157, 1e+20, %v155
  %v161 = vmin.f32 %v151, %v160
  %v162 = vsel %vm157, 1, 0
  %v163 = vcvt.s32.f32 %v162
  %v164 = vadd.f32 %v154, %v163
  %v165 = vrot.slane %v145, 4
  %vm167 = vcmp.ge.f32.partialorder %v114, %v165
  %v168 = vsel %vm167, %v165, -1e+20
  %v169 = vmax.f32 %v159, %v168
  %v170 = vsel %vm167, 1e+20, %v165
  %v171 = vmin.f32 %v161, %v170
  %v172 = vsel %vm167, 1, 0
  %v173 = vcvt.s32.f32 %v172
  %v174 = vadd.f32 %v164, %v173
  %v175 = vrot.slane %v145, 6
  %vm177 = vcmp.ge.f32.partialorder %v114, %v175
  %v178 = vsel %vm177, %v175, -1e+20
  %v179 = vmax.f32 %v169, %v178
  %v180 = vsel %vm177, 1e+20, %v175
  %v181 = vmin.f32 %v171, %v180
  %v182 = vsel %vm177, 1, 0
  %v183 = vcvt.s32.f32 %v182
  %v184 = vadd.f32 %v174, %v183
  %v185 = vsub.f32 %v184, 1.0
  %v186 = vsub.f32 %v114, %v179
  %v187 = vadd.f32 %v181, 1e-06
  %v188 = vsub.f32 %v187, %v179
  %v189 = vrcp.pop %v188
  %v190 = vmul.f32 %v186, %v189
  %v191 = vadd.f32 %v185, %v190
  %v192 = vrot.slane %v118, 4
  %v194 = vmul.f32 %v191, %v192
  %v195 = vmul.f32 %v131, %v194
  %v196 = vadd.f32 %v122, %v195
  %vm197 = vcmp.ne.f32.partialorder %v114, -1337.0
  %v198 = vsel %vm197, 1, 0
  %v199 = vcvt.s32.f32 %v198
  %v200 = vmul.f32 %v196, %v199
  %v201 = vmax.f32 %v200, -6.0
  %v202 = vmin.f32 %v201, 6.0
  %203 = vst [vmem:[%s2 + $0xe] sm:$0x3] %v202
  %v204 = vld [vmem:[%s0 + $0xd] sm:$0x3]
  %v205 = vrot.slane %v118, 6
  %v207 = vsub.f32 %v204, %v205
  %209 = vset.pattern.permute.xlu0 0
  %210 = vperm.xlu0 %209, %v16
  %v211 = vpop.permute.xlu0 %210
  %v212 = vrot.slane %v211, 2
  %v214 = vmul.f32 %v207, %v212
  %v216 = vadd.f32 %v214, %v211
  %v217 = vmax.f32 %v216, -0.999999
  %v218 = vmin.f32 %v217, 0.999999
  %vm219 = vcmp.ne.f32.partialorder %v204, -1337.0
  %v220 = vsel %vm219, 1, 0
  %v221 = vcvt.s32.f32 %v220
  %v222 = vmul.f32 %v218, %v221
  %v223 = vmax.f32 %v222, -6.0
  %v224 = vmin.f32 %v223, 6.0
  %225 = vst [vmem:[%s2 + $0x10] sm:$0x3] %v224
  // Predicated region
  $region10: #{preprocessor_forward_feature_major.1} parent=0 // pred_check
    _
  $region11: #{preprocessor_forward_feature_major.1} parent=0 // pred_check_branch
    %227 = sbr.rel (0) target = $region13
  $region12: #{preprocessor_forward_feature_major.1} parent=0 // pred_region
    _
  $region13: #{preprocessor_forward_feature_major.1} parent=0 // pred_fallthru
    _
  // Predicated region
  $region14: #{preprocessor_forward_feature_major.1} parent=0 // pred_check
    _
  $region15: #{preprocessor_forward_feature_major.1} parent=0 // pred_check_branch
    %229 = sbr.rel (0) target = $region17
  $region16: #{preprocessor_forward_feature_major.1} parent=0 // pred_region
    _
  $region17: #{preprocessor_forward_feature_major.1} parent=0 // pred_fallthru
    _

</llo_original>
